<compile_context>
chip_gen: v5e
topology: v5e:2x2
jax: 0.10.0
libtpu: 0.0.40
codegen_flags: <defaults>
</compile_context>

<pallas_src>
import jax
import jax.numpy as jnp
from jax.experimental import pallas as pl
from jax.experimental.pallas import tpu as pltpu


def _task_classifier_kernel(x_ref, w1_ref, b1_ref, w2_ref, b2_ref, out_ref):
    # fc1: Linear + ReLU (MXU matmul, f32 accumulate; biases kept in f32)
    x = x_ref[...]
    h = jnp.dot(x, w1_ref[...], preferred_element_type=jnp.float32) + b1_ref[...]
    h = jnp.maximum(h, 0.0)
    # fc2: Linear (cast h back to the weight dtype so bf16 compute stays on the
    # MXU's narrow path; no-op when everything is f32)
    y = jnp.dot(h.astype(w2_ref.dtype), w2_ref[...],
                preferred_element_type=jnp.float32) + b2_ref[...]
    out_ref[...] = y.astype(out_ref.dtype)


def _round_up(n, m):
    return (n + m - 1) // m * m


def _default_num_row_tiles(batch):
    """1 tile on single-TC chips (v5e/v6e); 2 tiles on 2-TC chips (v7x)."""
    two_tc = False
    try:
        kind = jax.devices()[0].device_kind.lower()
        two_tc = ("v7" in kind) or ("7x" in kind)
    except Exception:
        two_tc = False
    if two_tc and batch >= 16:
        return 2
    return 1


def task_classifier_forward(x, w1, b1, w2, b2, *, num_row_tiles=None, compute_dtype=None):
    """Fused TaskClassifier forward.

    x : [B, D]   (sa_embeddings)
    w1: [D, H]   b1: [1, H]     (fc1, stored input-major)
    w2: [H, T]   b2: [1, T]     (fc2, stored input-major)
    returns logits [B, T] in x.dtype
    """
    B, D = x.shape
    H = w1.shape[1]
    T = w2.shape[1]
    out_dtype = x.dtype

    # Optional narrow compute path (recommended on v6e/v7x): cast activations and
    # weights, keep biases + MXU accumulation in f32.
    if compute_dtype is not None:
        x = x.astype(compute_dtype)
        w1 = w1.astype(compute_dtype)
        w2 = w2.astype(compute_dtype)

    if num_row_tiles is None:
        num_row_tiles = _default_num_row_tiles(B)

    # Row tile: multiple of 8 sublanes, chosen so the grid has exactly
    # `num_row_tiles` steps. Batch pad is a no-op whenever tb * num_row_tiles == B.
    tb = _round_up(max(1, pl.cdiv(B, num_row_tiles)), 8)
    B_pad = tb * num_row_tiles
    x_in = x if B_pad == B else jnp.pad(x, ((0, B_pad - B), (0, 0)))

    out_p = pl.pallas_call(
        _task_classifier_kernel,
        out_shape=jax.ShapeDtypeStruct((B_pad, T), out_dtype),
        grid=(num_row_tiles,),
        in_specs=[
            pl.BlockSpec((tb, D), lambda i: (i, 0)),   # activations: pipelined over batch
            pl.BlockSpec((D, H), lambda i: (0, 0)),    # w1: weight-stationary
            pl.BlockSpec((1, H), lambda i: (0, 0)),    # b1: stationary (f32)
            pl.BlockSpec((H, T), lambda i: (0, 0)),    # w2: stationary
            pl.BlockSpec((1, T), lambda i: (0, 0)),    # b2: stationary (f32)
        ],
        out_specs=pl.BlockSpec((tb, T), lambda i: (i, 0)),   # unpadded task dim
        compiler_params=pltpu.CompilerParams(
            dimension_semantics=("parallel",),  # shard batch tiles across TCs (v7x)
        ),
    )(x_in, w1, b1, w2, b2)

    # Padded batch rows hold garbage logits (ReLU(b1)@w2 + b2) -> must slice them off.
    return out_p if B_pad == B else out_p[:B]


def task_classifier_reference(x, w1, b1, w2, b2):
    h = jnp.maximum(x @ w1 + b1, 0.0)
    return h @ w2 + b2


if __name__ == "__main__":
    # args.rnn_hidden_dim = 32, args.n_tasks = 8; batch of flattened agent-state embeddings.
    rnn_hidden_dim = 32
    n_tasks = 8
    batch = 256  # multiple of 16 -> no batch pad / slice for either 1- or 2-tile grids

    key = jax.random.PRNGKey(0)
    kx, kw1, kb1, kw2, kb2 = jax.random.split(key, 5)

    x = jax.random.normal(kx, (batch, rnn_hidden_dim), dtype=jnp.float32)
    # Deterministic synthetic parameters (nn.Linear-style scale), stored [in, out].
    scale = 1.0 / jnp.sqrt(rnn_hidden_dim)
    w1 = jax.random.uniform(kw1, (rnn_hidden_dim, rnn_hidden_dim),
                            minval=-1.0, maxval=1.0, dtype=jnp.float32) * scale
    b1 = jax.random.uniform(kb1, (1, rnn_hidden_dim),
                            minval=-1.0, maxval=1.0, dtype=jnp.float32) * scale
    w2 = jax.random.uniform(kw2, (rnn_hidden_dim, n_tasks),
                            minval=-1.0, maxval=1.0, dtype=jnp.float32) * scale
    b2 = jax.random.uniform(kb2, (1, n_tasks),
                            minval=-1.0, maxval=1.0, dtype=jnp.float32) * scale

    out = task_classifier_forward(x, w1, b1, w2, b2)
    jax.block_until_ready(out)

    ref = task_classifier_reference(x, w1, b1, w2, b2)
    assert out.shape == (batch, n_tasks)
    assert jnp.allclose(out, ref, atol=1e-5, rtol=1e-5), "mismatch vs reference"

    print("KERNEL_OK")
</pallas_src>

<mosaic_0001>
module attributes {stable_mosaic.version = 11 : i64} {
  func.func @_task_classifier_kernel(%arg0: i32, %arg1: memref<256x32xf32, #tpu.memory_space<vmem>>, %arg2: memref<32x32xf32, #tpu.memory_space<vmem>>, %arg3: memref<1x32xf32, #tpu.memory_space<vmem>>, %arg4: memref<32x8xf32, #tpu.memory_space<vmem>>, %arg5: memref<1x8xf32, #tpu.memory_space<vmem>>, %arg6: memref<256x8xf32, #tpu.memory_space<vmem>>) attributes {dimension_semantics = [#tpu.dimension_semantics<parallel>], iteration_bounds = array<i64: 1>, scalar_prefetch = 0 : i64, scratch_operands = 0 : i64, tpu.core_type = #tpu.core_type<tc>, window_params = [{transform_indices = @transform_0, window_bounds = array<i64: 256, 32>}, {pipeline_mode = #tpu.pipeline_mode<synchronous>, transform_indices = @transform_1, window_bounds = array<i64: 32, 32>}, {pipeline_mode = #tpu.pipeline_mode<synchronous>, transform_indices = @transform_2, window_bounds = array<i64: 1, 32>}, {pipeline_mode = #tpu.pipeline_mode<synchronous>, transform_indices = @transform_3, window_bounds = array<i64: 32, 8>}, {pipeline_mode = #tpu.pipeline_mode<synchronous>, transform_indices = @transform_4, window_bounds = array<i64: 1, 8>}, {transform_indices = @transform_5, window_bounds = array<i64: 256, 8>}]} {
    %c0 = arith.constant 0 : index
    %c0_0 = arith.constant 0 : index
    %0 = vector.load %arg1[%c0, %c0_0] : memref<256x32xf32, #tpu.memory_space<vmem>>, vector<256x32xf32>
    %c0_1 = arith.constant 0 : index
    %c0_2 = arith.constant 0 : index
    %1 = vector.load %arg2[%c0_1, %c0_2] : memref<32x32xf32, #tpu.memory_space<vmem>>, vector<32x32xf32>
    %cst = arith.constant dense<0.000000e+00> : vector<256x32xf32>
    %2 = tpu.matmul %0, %1, %cst {dimension_numbers = #tpu.dot_dimension_numbers<[1], [0], [0], [1], [0, 0, 1, 1], [], []>} : vector<256x32xf32>, vector<32x32xf32>, vector<256x32xf32> -> vector<256x32xf32>
    %c0_3 = arith.constant 0 : index
    %c0_4 = arith.constant 0 : index
    %3 = vector.load %arg3[%c0_3, %c0_4] : memref<1x32xf32, #tpu.memory_space<vmem>>, vector<1x32xf32>
    %4 = vector.broadcast %3 : vector<1x32xf32> to vector<256x32xf32>
    %5 = arith.addf %2, %4 : vector<256x32xf32>
    %cst_5 = arith.constant 0.000000e+00 : f32
    %6 = vector.broadcast %cst_5 : f32 to vector<256x32xf32>
    %7 = arith.maximumf %5, %6 : vector<256x32xf32>
    %c0_6 = arith.constant 0 : index
    %c0_7 = arith.constant 0 : index
    %8 = vector.load %arg4[%c0_6, %c0_7] : memref<32x8xf32, #tpu.memory_space<vmem>>, vector<32x8xf32>
    %cst_8 = arith.constant dense<0.000000e+00> : vector<256x8xf32>
    %9 = tpu.matmul %7, %8, %cst_8 {dimension_numbers = #tpu.dot_dimension_numbers<[1], [0], [0], [1], [0, 0, 1, 1], [], []>} : vector<256x32xf32>, vector<32x8xf32>, vector<256x8xf32> -> vector<256x8xf32>
    %c0_9 = arith.constant 0 : index
    %c0_10 = arith.constant 0 : index
    %10 = vector.load %arg5[%c0_9, %c0_10] : memref<1x8xf32, #tpu.memory_space<vmem>>, vector<1x8xf32>
    %11 = vector.broadcast %10 : vector<1x8xf32> to vector<256x8xf32>
    %12 = arith.addf %9, %11 : vector<256x8xf32>
    %c0_11 = arith.constant 0 : index
    %c0_12 = arith.constant 0 : index
    %13 = vector.load %arg6[%c0_11, %c0_12] : memref<256x8xf32, #tpu.memory_space<vmem>>, vector<256x8xf32>
    tpu.vector_store %arg6[%c0_11, %c0_12], %12 {strides = array<i32>} : memref<256x8xf32, #tpu.memory_space<vmem>>, vector<256x8xf32>,
    return
  }
  func.func @transform_0(%arg0: i32) -> (i32, i32) {
    %c0_i32 = arith.constant 0 : i32
    %c0_i32_0 = arith.constant 0 : i32
    return %arg0, %c0_i32 : i32, i32
  }
  func.func @transform_1(%arg0: i32) -> (i32, i32) {
    %c0_i32 = arith.constant 0 : i32
    %c0_i32_0 = arith.constant 0 : i32
    %c0_i32_1 = arith.constant 0 : i32
    return %c0_i32, %c0_i32_0 : i32, i32
  }
  func.func @transform_2(%arg0: i32) -> (i32, i32) {
    %c0_i32 = arith.constant 0 : i32
    %c0_i32_0 = arith.constant 0 : i32
    %c0_i32_1 = arith.constant 0 : i32
    return %c0_i32, %c0_i32_0 : i32, i32
  }
  func.func @transform_3(%arg0: i32) -> (i32, i32) {
    %c0_i32 = arith.constant 0 : i32
    %c0_i32_0 = arith.constant 0 : i32
    %c0_i32_1 = arith.constant 0 : i32
    return %c0_i32, %c0_i32_0 : i32, i32
  }
  func.func @transform_4(%arg0: i32) -> (i32, i32) {
    %c0_i32 = arith.constant 0 : i32
    %c0_i32_0 = arith.constant 0 : i32
    %c0_i32_1 = arith.constant 0 : i32
    return %c0_i32, %c0_i32_0 : i32, i32
  }
  func.func @transform_5(%arg0: i32) -> (i32, i32) {
    %c0_i32 = arith.constant 0 : i32
    %c0_i32_0 = arith.constant 0 : i32
    return %arg0, %c0_i32 : i32, i32
  }
}

</mosaic_0001>

<llo_original>
// kernel: tpu_custom_call.1
$region0: #{tpu_custom_call.1}
  #allocation0 [shape = 'u32[]', space=smem, size = 0x4, offset = 0x4, fixed_abs, tag = 'smem constant byte address 0x4 - core index']
  #allocation1 [shape = 'u32[72,128]{1,0:T(1,128)}', space=vmem, size = 0x9000, scoped, tag = 'internal scratch']
  %s0 = inlined_call_operand.vmem [shape: f32[256,32], index: 0, kind: input, shape index: {}]
  %s1 = inlined_call_operand.vmem [shape: f32[32,32], index: 1, kind: input, shape index: {}]
  %s2 = inlined_call_operand.vmem [shape: f32[1,32], index: 2, kind: input, shape index: {}]
  %s3 = inlined_call_operand.vmem [shape: f32[32,8], index: 3, kind: input, shape index: {}]
  %s4 = inlined_call_operand.vmem [shape: f32[1,8], index: 4, kind: input, shape index: {}]
  %s5 = inlined_call_operand.vmem [shape: f32[256,8], index: 5, kind: output, shape index: {}]
  %s6 = sld [smem:[#allocation0]]
  $region30: #{tpu_custom_call.1} parent=0
    _
  %s8 = ssub.s32 1, %s6
  %s9 = scalar_select 0, %s8, %s6
  // Predicated region
  $region2: #{tpu_custom_call.1} parent=0 // pred_check
    _
  $region3: #{tpu_custom_call.1} parent=0 // pred_check_branch
    %11 = sbr.rel (0) target = $region5
  $region4: #{tpu_custom_call.1} parent=0 // pred_region
    _
  $region5: #{tpu_custom_call.1} parent=0 // pred_fallthru
    _
  // Predicated region
  $region6: #{tpu_custom_call.1} parent=0 // pred_check
    _
  $region7: #{tpu_custom_call.1} parent=0 // pred_check_branch
    %13 = sbr.rel (0) target = $region9
  $region8: #{tpu_custom_call.1} parent=0 // pred_region
    _
  $region9: #{tpu_custom_call.1} parent=0 // pred_fallthru
    _
  // Predicated region
  $region10: #{tpu_custom_call.1} parent=0 // pred_check
    _
  $region11: #{tpu_custom_call.1} parent=0 // pred_check_branch
    %15 = sbr.rel (0) target = $region13
  $region12: #{tpu_custom_call.1} parent=0 // pred_region
    _
  $region13: #{tpu_custom_call.1} parent=0 // pred_fallthru
    _
  // Predicated region
  $region14: #{tpu_custom_call.1} parent=0 // pred_check
    _
  $region15: #{tpu_custom_call.1} parent=0 // pred_check_branch
    %17 = sbr.rel (0) target = $region17
  $region16: #{tpu_custom_call.1} parent=0 // pred_region
    _
  $region17: #{tpu_custom_call.1} parent=0 // pred_fallthru
    _
  // Predicated region
  $region18: #{tpu_custom_call.1} parent=0 // pred_check
    _
  $region19: #{tpu_custom_call.1} parent=0 // pred_check_branch
    %19 = sbr.rel (0) target = $region21
  $region20: #{tpu_custom_call.1} parent=0 // pred_region
    _
  $region21: #{tpu_custom_call.1} parent=0 // pred_fallthru
    _
  %v20 = vld [vmem:[%s0] sm:$0xff]
  %v21 = vld [vmem:[%s0 + $0x8] sm:$0xff]
  %v22 = vld [vmem:[%s0 + $0x10] sm:$0xff]
  %v23 = vld [vmem:[%s0 + $0x18] sm:$0xff]
  %v24 = vld [vmem:[%s0 + $0x20] sm:$0xff]
  %v25 = vld [vmem:[%s0 + $0x28] sm:$0xff]
  %v26 = vld [vmem:[%s0 + $0x30] sm:$0xff]
  %v27 = vld [vmem:[%s0 + $0x38] sm:$0xff]
  %v28 = vld [vmem:[%s0 + $0x40] sm:$0xff]
  %v29 = vld [vmem:[%s0 + $0x48] sm:$0xff]
  %v30 = vld [vmem:[%s0 + $0x50] sm:$0xff]
  %v31 = vld [vmem:[%s0 + $0x58] sm:$0xff]
  %v32 = vld [vmem:[%s0 + $0x60] sm:$0xff]
  %v33 = vld [vmem:[%s0 + $0x68] sm:$0xff]
  %v34 = vld [vmem:[%s0 + $0x70] sm:$0xff]
  %v35 = vld [vmem:[%s0 + $0x78] sm:$0xff]
  %v36 = vld [vmem:[%s0 + $0x80] sm:$0xff]
  %v37 = vld [vmem:[%s0 + $0x88] sm:$0xff]
  %v38 = vld [vmem:[%s0 + $0x90] sm:$0xff]
  %v39 = vld [vmem:[%s0 + $0x98] sm:$0xff]
  %v40 = vld [vmem:[%s0 + $0xa0] sm:$0xff]
  %v41 = vld [vmem:[%s0 + $0xa8] sm:$0xff]
  %v42 = vld [vmem:[%s0 + $0xb0] sm:$0xff]
  %v43 = vld [vmem:[%s0 + $0xb8] sm:$0xff]
  %v44 = vld [vmem:[%s0 + $0xc0] sm:$0xff]
  %v45 = vld [vmem:[%s0 + $0xc8] sm:$0xff]
  %v46 = vld [vmem:[%s0 + $0xd0] sm:$0xff]
  %v47 = vld [vmem:[%s0 + $0xd8] sm:$0xff]
  %v48 = vld [vmem:[%s0 + $0xe0] sm:$0xff]
  %v49 = vld [vmem:[%s0 + $0xe8] sm:$0xff]
  %v50 = vld [vmem:[%s0 + $0xf0] sm:$0xff]
  %v51 = vld [vmem:[%s0 + $0xf8] sm:$0xff]
  %v52 = vld [vmem:[%s1] sm:$0xff]
  %v53 = vld [vmem:[%s1 + $0x8] sm:$0xff]
  %v54 = vld [vmem:[%s1 + $0x10] sm:$0xff]
  %v55 = vld [vmem:[%s1 + $0x18] sm:$0xff]
  %v56 = vld [vmem:[%s2] sm:$0x1]
  %v58 = vperm.slane %v56, 0
  %vm60 = vcmask 261120
  %v62 = vsel %vm60, %v20, 0
  %v65 = vsel %vm60, %v21, 0
  %v68 = vsel %vm60, %v22, 0
  %v71 = vsel %vm60, %v23, 0
  %v74 = vsel %vm60, %v24, 0
  %v77 = vsel %vm60, %v25, 0
  %v80 = vsel %vm60, %v26, 0
  %v83 = vsel %vm60, %v27, 0
  %v86 = vsel %vm60, %v28, 0
  %v89 = vsel %vm60, %v29, 0
  %v92 = vsel %vm60, %v30, 0
  %v95 = vsel %vm60, %v31, 0
  %v98 = vsel %vm60, %v32, 0
  %v101 = vsel %vm60, %v33, 0
  %v104 = vsel %vm60, %v34, 0
  %v107 = vsel %vm60, %v35, 0
  %v110 = vsel %vm60, %v36, 0
  %v113 = vsel %vm60, %v37, 0
  %v116 = vsel %vm60, %v38, 0
  %v119 = vsel %vm60, %v39, 0
  %v122 = vsel %vm60, %v40, 0
  %v125 = vsel %vm60, %v41, 0
  %v128 = vsel %vm60, %v42, 0
  %v131 = vsel %vm60, %v43, 0
  %v134 = vsel %vm60, %v44, 0
  %v137 = vsel %vm60, %v45, 0
  %v140 = vsel %vm60, %v46, 0
  %v143 = vsel %vm60, %v47, 0
  %v146 = vsel %vm60, %v48, 0
  %v149 = vsel %vm60, %v49, 0
  %v152 = vsel %vm60, %v50, 0
  %v155 = vsel %vm60, %v51, 0
  %157 = vmatpush.msra.mxu0 0.0
  %158 = vmatpush.msra.mxu0 0.0
  %159 = vmatpush.msra.mxu0 0.0
  %160 = vmatpush.msra.mxu0 0.0
  %161 = vmatpush.msra.mxu0 0.0
  %162 = vmatpush.msra.mxu0 0.0
  %163 = vmatpush.msra.mxu0 0.0
  %164 = vmatpush.msra.mxu0 0.0
  %165 = vmatpush.msra.mxu0 0.0
  %166 = vmatpush.msra.mxu0 0.0
  %167 = vmatpush.msra.mxu0 0.0
  %168 = vmatpush.msra.mxu0 0.0
  %169 = vmatpush.msra.mxu0 %v55
  %170 = vmatpush.msra.mxu0 %v54
  %171 = vmatpush.msra.mxu0 %v53
  %172 = vmatpush.msra.mxu0 %v52
  %173 = vmatmul.f32.gmra.mxu0 %v62
  %v174 = vpop.f32.mrf.mxu0
  %v175 = vadd.f32 %v58, %v174
  %176 = vmatmul.f32.gmra.mxu0 %v65
  %v177 = vpop.f32.mrf.mxu0
  %v178 = vadd.f32 %v58, %v177
  %179 = vmatmul.f32.gmra.mxu0 %v68
  %v180 = vpop.f32.mrf.mxu0
  %v181 = vadd.f32 %v58, %v180
  %182 = vmatmul.f32.gmra.mxu0 %v71
  %v183 = vpop.f32.mrf.mxu0
  %v184 = vadd.f32 %v58, %v183
  %185 = vmatmul.f32.gmra.mxu0 %v74
  %v186 = vpop.f32.mrf.mxu0
  %v187 = vadd.f32 %v58, %v186
  %188 = vmatmul.f32.gmra.mxu0 %v77
  %v189 = vpop.f32.mrf.mxu0
  %v190 = vadd.f32 %v58, %v189
  %191 = vmatmul.f32.gmra.mxu0 %v80
  %v192 = vpop.f32.mrf.mxu0
  %v193 = vadd.f32 %v58, %v192
  %194 = vmatmul.f32.gmra.mxu0 %v83
  %v195 = vpop.f32.mrf.mxu0
  %v196 = vadd.f32 %v58, %v195
  %197 = vmatmul.f32.gmra.mxu0 %v86
  %v198 = vpop.f32.mrf.mxu0
  %v199 = vadd.f32 %v58, %v198
  %200 = vmatmul.f32.gmra.mxu0 %v89
  %v201 = vpop.f32.mrf.mxu0
  %v202 = vadd.f32 %v58, %v201
  %203 = vmatmul.f32.gmra.mxu0 %v92
  %v204 = vpop.f32.mrf.mxu0
  %v205 = vadd.f32 %v58, %v204
  %206 = vmatmul.f32.gmra.mxu0 %v95
  %v207 = vpop.f32.mrf.mxu0
  %v208 = vadd.f32 %v58, %v207
  %209 = vmatmul.f32.gmra.mxu0 %v98
  %v210 = vpop.f32.mrf.mxu0
  %v211 = vadd.f32 %v58, %v210
  %212 = vmatmul.f32.gmra.mxu0 %v101
  %v213 = vpop.f32.mrf.mxu0
  %v214 = vadd.f32 %v58, %v213
  %215 = vmatmul.f32.gmra.mxu0 %v104
  %v216 = vpop.f32.mrf.mxu0
  %v217 = vadd.f32 %v58, %v216
  %218 = vmatmul.f32.gmra.mxu0 %v107
  %v219 = vpop.f32.mrf.mxu0
  %v220 = vadd.f32 %v58, %v219
  %221 = vmatmul.f32.gmra.mxu0 %v110
  %v222 = vpop.f32.mrf.mxu0
  %v223 = vadd.f32 %v58, %v222
  %224 = vmatmul.f32.gmra.mxu0 %v113
  %v225 = vpop.f32.mrf.mxu0
  %v226 = vadd.f32 %v58, %v225
  %227 = vmatmul.f32.gmra.mxu0 %v116
  %v228 = vpop.f32.mrf.mxu0
  %v229 = vadd.f32 %v58, %v228
  %230 = vmatmul.f32.gmra.mxu0 %v119
  %v231 = vpop.f32.mrf.mxu0
  %v232 = vadd.f32 %v58, %v231
  %233 = vmatmul.f32.gmra.mxu0 %v122
  %v234 = vpop.f32.mrf.mxu0
  %v235 = vadd.f32 %v58, %v234
  %236 = vmatmul.f32.gmra.mxu0 %v125
  %v237 = vpop.f32.mrf.mxu0
  %v238 = vadd.f32 %v58, %v237
  %239 = vmatmul.f32.gmra.mxu0 %v128
  %v240 = vpop.f32.mrf.mxu0
  %v241 = vadd.f32 %v58, %v240
  %242 = vmatmul.f32.gmra.mxu0 %v131
  %v243 = vpop.f32.mrf.mxu0
  %v244 = vadd.f32 %v58, %v243
  %245 = vmatmul.f32.gmra.mxu0 %v134
  %v246 = vpop.f32.mrf.mxu0
  %v247 = vadd.f32 %v58, %v246
  %248 = vmatmul.f32.gmra.mxu0 %v137
  %v249 = vpop.f32.mrf.mxu0
  %v250 = vadd.f32 %v58, %v249
  %251 = vmatmul.f32.gmra.mxu0 %v140
  %v252 = vpop.f32.mrf.mxu0
  %v253 = vadd.f32 %v58, %v252
  %254 = vmatmul.f32.gmra.mxu0 %v143
  %v255 = vpop.f32.mrf.mxu0
  %v256 = vadd.f32 %v58, %v255
  %257 = vmatmul.f32.gmra.mxu0 %v146
  %v258 = vpop.f32.mrf.mxu0
  %v259 = vadd.f32 %v58, %v258
  %260 = vmatmul.f32.gmra.mxu0 %v149
  %v261 = vpop.f32.mrf.mxu0
  %v262 = vadd.f32 %v58, %v261
  %263 = vmatmul.f32.gmra.mxu0 %v152
  %v264 = vpop.f32.mrf.mxu0
  %v265 = vadd.f32 %v58, %v264
  %266 = vmatmul.f32.gmra.mxu0 %v155
  %v267 = vpop.f32.mrf.mxu0
  %v268 = vadd.f32 %v58, %v267
  %269 = vdwg.mxu0
  %v270 = vmax.f32 %v175, 0.0
  %v271 = vmax.f32 %v178, 0.0
  %v272 = vmax.f32 %v181, 0.0
  %v273 = vmax.f32 %v184, 0.0
  %v274 = vmax.f32 %v187, 0.0
  %v275 = vmax.f32 %v190, 0.0
  %v276 = vmax.f32 %v193, 0.0
  %v277 = vmax.f32 %v196, 0.0
  %v278 = vmax.f32 %v199, 0.0
  %v279 = vmax.f32 %v202, 0.0
  %v280 = vmax.f32 %v205, 0.0
  %v281 = vmax.f32 %v208, 0.0
  %v282 = vmax.f32 %v211, 0.0
  %v283 = vmax.f32 %v214, 0.0
  %v284 = vmax.f32 %v217, 0.0
  %v285 = vmax.f32 %v220, 0.0
  %v286 = vmax.f32 %v223, 0.0
  %v287 = vmax.f32 %v226, 0.0
  %v288 = vmax.f32 %v229, 0.0
  %v289 = vmax.f32 %v232, 0.0
  %v290 = vmax.f32 %v235, 0.0
  %v291 = vmax.f32 %v238, 0.0
  %v292 = vmax.f32 %v241, 0.0
  %v293 = vmax.f32 %v244, 0.0
  %v294 = vmax.f32 %v247, 0.0
  %v295 = vmax.f32 %v250, 0.0
  %v296 = vmax.f32 %v253, 0.0
  %v297 = vmax.f32 %v256, 0.0
  %v298 = vmax.f32 %v259, 0.0
  %v299 = vmax.f32 %v262, 0.0
  %v300 = vmax.f32 %v265, 0.0
  %v301 = vmax.f32 %v268, 0.0
  %v302 = vld [vmem:[%s3] sm:$0xff]
  %v303 = vld [vmem:[%s3 + $0x8] sm:$0xff]
  %v304 = vld [vmem:[%s3 + $0x10] sm:$0xff]
  %v305 = vld [vmem:[%s3 + $0x18] sm:$0xff]
  %v306 = vld [vmem:[%s4] sm:$0x1]
  %v308 = vperm.slane %v306, 0
  %v311 = vsel %vm60, %v270, 0
  %v314 = vsel %vm60, %v271, 0
  %v317 = vsel %vm60, %v272, 0
  %v320 = vsel %vm60, %v273, 0
  %v323 = vsel %vm60, %v274, 0
  %v326 = vsel %vm60, %v275, 0
  %v329 = vsel %vm60, %v276, 0
  %v332 = vsel %vm60, %v277, 0
  %v335 = vsel %vm60, %v278, 0
  %v338 = vsel %vm60, %v279, 0
  %v341 = vsel %vm60, %v280, 0
  %v344 = vsel %vm60, %v281, 0
  %v347 = vsel %vm60, %v282, 0
  %v350 = vsel %vm60, %v283, 0
  %v353 = vsel %vm60, %v284, 0
  %v356 = vsel %vm60, %v285, 0
  %v359 = vsel %vm60, %v286, 0
  %v362 = vsel %vm60, %v287, 0
  %v365 = vsel %vm60, %v288, 0
  %v368 = vsel %vm60, %v289, 0
  %v371 = vsel %vm60, %v290, 0
  %v374 = vsel %vm60, %v291, 0
  %v377 = vsel %vm60, %v292, 0
  %v380 = vsel %vm60, %v293, 0
  %v383 = vsel %vm60, %v294, 0
  %v386 = vsel %vm60, %v295, 0
  %v389 = vsel %vm60, %v296, 0
  %v392 = vsel %vm60, %v297, 0
  %v395 = vsel %vm60, %v298, 0
  %v398 = vsel %vm60, %v299, 0
  %v401 = vsel %vm60, %v300, 0
  %v404 = vsel %vm60, %v301, 0
  %406 = vmatpush.msra.mxu0 0.0
  %407 = vmatpush.msra.mxu0 0.0
  %408 = vmatpush.msra.mxu0 0.0
  %409 = vmatpush.msra.mxu0 0.0
  %410 = vmatpush.msra.mxu0 0.0
  %411 = vmatpush.msra.mxu0 0.0
  %412 = vmatpush.msra.mxu0 0.0
  %413 = vmatpush.msra.mxu0 0.0
  %414 = vmatpush.msra.mxu0 0.0
  %415 = vmatpush.msra.mxu0 0.0
  %416 = vmatpush.msra.mxu0 0.0
  %417 = vmatpush.msra.mxu0 0.0
  %418 = vmatpush.msra.mxu0 %v305
  %419 = vmatpush.msra.mxu0 %v304
  %420 = vmatpush.msra.mxu0 %v303
  %421 = vmatpush.msra.mxu0 %v302
  %422 = vmatmul.f32.gmra.mxu0 %v311
  %v423 = vpop.f32.mrf.mxu0
  %v424 = vadd.f32 %v308, %v423
  %425 = vmatmul.f32.gmra.mxu0 %v314
  %v426 = vpop.f32.mrf.mxu0
  %v427 = vadd.f32 %v308, %v426
  %428 = vmatmul.f32.gmra.mxu0 %v317
  %v429 = vpop.f32.mrf.mxu0
  %v430 = vadd.f32 %v308, %v429
  %431 = vmatmul.f32.gmra.mxu0 %v320
  %v432 = vpop.f32.mrf.mxu0
  %v433 = vadd.f32 %v308, %v432
  %434 = vmatmul.f32.gmra.mxu0 %v323
  %v435 = vpop.f32.mrf.mxu0
  %v436 = vadd.f32 %v308, %v435
  %437 = vmatmul.f32.gmra.mxu0 %v326
  %v438 = vpop.f32.mrf.mxu0
  %v439 = vadd.f32 %v308, %v438
  %440 = vmatmul.f32.gmra.mxu0 %v329
  %v441 = vpop.f32.mrf.mxu0
  %v442 = vadd.f32 %v308, %v441
  %443 = vmatmul.f32.gmra.mxu0 %v332
  %v444 = vpop.f32.mrf.mxu0
  %v445 = vadd.f32 %v308, %v444
  %446 = vmatmul.f32.gmra.mxu0 %v335
  %v447 = vpop.f32.mrf.mxu0
  %v448 = vadd.f32 %v308, %v447
  %449 = vmatmul.f32.gmra.mxu0 %v338
  %v450 = vpop.f32.mrf.mxu0
  %v451 = vadd.f32 %v308, %v450
  %452 = vmatmul.f32.gmra.mxu0 %v341
  %v453 = vpop.f32.mrf.mxu0
  %v454 = vadd.f32 %v308, %v453
  %455 = vmatmul.f32.gmra.mxu0 %v344
  %v456 = vpop.f32.mrf.mxu0
  %v457 = vadd.f32 %v308, %v456
  %458 = vmatmul.f32.gmra.mxu0 %v347
  %v459 = vpop.f32.mrf.mxu0
  %v460 = vadd.f32 %v308, %v459
  %461 = vmatmul.f32.gmra.mxu0 %v350
  %v462 = vpop.f32.mrf.mxu0
  %v463 = vadd.f32 %v308, %v462
  %464 = vmatmul.f32.gmra.mxu0 %v353
  %v465 = vpop.f32.mrf.mxu0
  %v466 = vadd.f32 %v308, %v465
  %467 = vmatmul.f32.gmra.mxu0 %v356
  %v468 = vpop.f32.mrf.mxu0
  %v469 = vadd.f32 %v308, %v468
  %470 = vmatmul.f32.gmra.mxu0 %v359
  %v471 = vpop.f32.mrf.mxu0
  %v472 = vadd.f32 %v308, %v471
  %473 = vmatmul.f32.gmra.mxu0 %v362
  %v474 = vpop.f32.mrf.mxu0
  %v475 = vadd.f32 %v308, %v474
  %476 = vmatmul.f32.gmra.mxu0 %v365
  %v477 = vpop.f32.mrf.mxu0
  %v478 = vadd.f32 %v308, %v477
  %479 = vmatmul.f32.gmra.mxu0 %v368
  %v480 = vpop.f32.mrf.mxu0
  %v481 = vadd.f32 %v308, %v480
  %482 = vmatmul.f32.gmra.mxu0 %v371
  %v483 = vpop.f32.mrf.mxu0
  %v484 = vadd.f32 %v308, %v483
  %485 = vmatmul.f32.gmra.mxu0 %v374
  %v486 = vpop.f32.mrf.mxu0
  %v487 = vadd.f32 %v308, %v486
  %488 = vmatmul.f32.gmra.mxu0 %v377
  %v489 = vpop.f32.mrf.mxu0
  %v490 = vadd.f32 %v308, %v489
  %491 = vmatmul.f32.gmra.mxu0 %v380
  %v492 = vpop.f32.mrf.mxu0
  %v493 = vadd.f32 %v308, %v492
  %494 = vmatmul.f32.gmra.mxu0 %v383
  %v495 = vpop.f32.mrf.mxu0
  %v496 = vadd.f32 %v308, %v495
  %497 = vmatmul.f32.gmra.mxu0 %v386
  %v498 = vpop.f32.mrf.mxu0
  %v499 = vadd.f32 %v308, %v498
  %500 = vmatmul.f32.gmra.mxu0 %v389
  %v501 = vpop.f32.mrf.mxu0
  %v502 = vadd.f32 %v308, %v501
  %503 = vmatmul.f32.gmra.mxu0 %v392
  %v504 = vpop.f32.mrf.mxu0
  %v505 = vadd.f32 %v308, %v504
  %506 = vmatmul.f32.gmra.mxu0 %v395
  %v507 = vpop.f32.mrf.mxu0
  %v508 = vadd.f32 %v308, %v507
  %509 = vmatmul.f32.gmra.mxu0 %v398
  %v510 = vpop.f32.mrf.mxu0
  %v511 = vadd.f32 %v308, %v510
  %512 = vmatmul.f32.gmra.mxu0 %v401
  %v513 = vpop.f32.mrf.mxu0
  %v514 = vadd.f32 %v308, %v513
  %515 = vmatmul.f32.gmra.mxu0 %v404
  %v516 = vpop.f32.mrf.mxu0
  %v517 = vadd.f32 %v308, %v516
  %518 = vdwg.mxu0
  %vm519 = vcmask 64512
  %520 = vst.msk [vmem:[%s5] sm:$0xff] %vm519, %v424
  %521 = vst.msk [vmem:[%s5 + $0x8] sm:$0xff] %vm519, %v427
  %522 = vst.msk [vmem:[%s5 + $0x10] sm:$0xff] %vm519, %v430
  %523 = vst.msk [vmem:[%s5 + $0x18] sm:$0xff] %vm519, %v433
  %524 = vst.msk [vmem:[%s5 + $0x20] sm:$0xff] %vm519, %v436
  %525 = vst.msk [vmem:[%s5 + $0x28] sm:$0xff] %vm519, %v439
  %526 = vst.msk [vmem:[%s5 + $0x30] sm:$0xff] %vm519, %v442
  %527 = vst.msk [vmem:[%s5 + $0x38] sm:$0xff] %vm519, %v445
  %528 = vst.msk [vmem:[%s5 + $0x40] sm:$0xff] %vm519, %v448
  %529 = vst.msk [vmem:[%s5 + $0x48] sm:$0xff] %vm519, %v451
  %530 = vst.msk [vmem:[%s5 + $0x50] sm:$0xff] %vm519, %v454
  %531 = vst.msk [vmem:[%s5 + $0x58] sm:$0xff] %vm519, %v457
  %532 = vst.msk [vmem:[%s5 + $0x60] sm:$0xff] %vm519, %v460
  %533 = vst.msk [vmem:[%s5 + $0x68] sm:$0xff] %vm519, %v463
  %534 = vst.msk [vmem:[%s5 + $0x70] sm:$0xff] %vm519, %v466
  %535 = vst.msk [vmem:[%s5 + $0x78] sm:$0xff] %vm519, %v469
  %536 = vst.msk [vmem:[%s5 + $0x80] sm:$0xff] %vm519, %v472
  %537 = vst.msk [vmem:[%s5 + $0x88] sm:$0xff] %vm519, %v475
  %538 = vst.msk [vmem:[%s5 + $0x90] sm:$0xff] %vm519, %v478
  %539 = vst.msk [vmem:[%s5 + $0x98] sm:$0xff] %vm519, %v481
  %540 = vst.msk [vmem:[%s5 + $0xa0] sm:$0xff] %vm519, %v484
  %541 = vst.msk [vmem:[%s5 + $0xa8] sm:$0xff] %vm519, %v487
  %542 = vst.msk [vmem:[%s5 + $0xb0] sm:$0xff] %vm519, %v490
  %543 = vst.msk [vmem:[%s5 + $0xb8] sm:$0xff] %vm519, %v493
  %544 = vst.msk [vmem:[%s5 + $0xc0] sm:$0xff] %vm519, %v496
  %545 = vst.msk [vmem:[%s5 + $0xc8] sm:$0xff] %vm519, %v499
  %546 = vst.msk [vmem:[%s5 + $0xd0] sm:$0xff] %vm519, %v502
  %547 = vst.msk [vmem:[%s5 + $0xd8] sm:$0xff] %vm519, %v505
  %548 = vst.msk [vmem:[%s5 + $0xe0] sm:$0xff] %vm519, %v508
  %549 = vst.msk [vmem:[%s5 + $0xe8] sm:$0xff] %vm519, %v511
  %550 = vst.msk [vmem:[%s5 + $0xf0] sm:$0xff] %vm519, %v514
  %551 = vst.msk [vmem:[%s5 + $0xf8] sm:$0xff] %vm519, %v517
  // Predicated region
  $region22: #{tpu_custom_call.1} parent=0 // pred_check
    _
  $region23: #{tpu_custom_call.1} parent=0 // pred_check_branch
    %553 = sbr.rel (0) target = $region25
  $region24: #{tpu_custom_call.1} parent=0 // pred_region
    _
  $region25: #{tpu_custom_call.1} parent=0 // pred_fallthru
    _
  // Predicated region
  $region26: #{tpu_custom_call.1} parent=0 // pred_check
    _
  $region27: #{tpu_custom_call.1} parent=0 // pred_check_branch
    %555 = sbr.rel (0) target = $region29
  $region28: #{tpu_custom_call.1} parent=0 // pred_region
    _
  $region29: #{tpu_custom_call.1} parent=0 // pred_fallthru
    _

</llo_original>
